<compile_context>
chip_gen: v6e
topology: v6e:2x2x1
jax: 0.10.0
libtpu: 0.0.40
codegen_flags: <defaults>
</compile_context>

<pallas_src>
import numpy as np
import jax
import jax.numpy as jnp
from jax.experimental import pallas as pl
from jax.experimental.pallas import tpu as pltpu


# ----------------------------- Pallas kernel --------------------------------
def _rgcn_fused_kernel(dst_ref, src_ref, first_ref, last_ref,
                       a_ref, x_ref, w_ref, b_ref, o_ref):
    """Grid axis 0 iterates over ALL relations, sorted by destination type.

    Scalar-prefetch (SMEM) refs:
      dst_ref[r]   : destination node-type block index of relation r
      src_ref[r]   : source node-type block index of relation r
      first_ref[r] : 1 if r is the first relation of its destination group
      last_ref[r]  : 1 if r is the last relation of its destination group

    VMEM refs:
      a_ref : (1, N, N)          bf16 dense adjacency of relation r (dst x src)
      x_ref : (1, N, Din_pad)    bf16 source-type features (selected by src_ref)
      w_ref : (1, Din_pad, Dout_pad) bf16 per-relation weight
      b_ref : (1, Dout_pad)      f32 shared bias
      o_ref : (1, N, Dout_pad)   f32 output block of the destination type
    """
    r = pl.program_id(0)

    # Zero the (freshly resident) output block at the start of each dst group.
    @pl.when(first_ref[r] == 1)
    def _():
        o_ref[...] = jnp.zeros_like(o_ref)

    a = a_ref[0]                                   # (N, N)            bf16
    x = x_ref[0]                                   # (N, Din_pad)      bf16
    w = w_ref[0]                                   # (Din_pad, Dout_pad) bf16

    # Reassociated:  ((A @ X)/deg) @ W  ==  (A @ (X @ W)) / deg
    xw = jnp.dot(x, w, preferred_element_type=jnp.float32)          # (N, Dout) f32
    msg = jnp.dot(a, xw.astype(a.dtype),
                  preferred_element_type=jnp.float32)               # (N, Dout) f32

    # norm='right': divide by in-degree, clamped to >= 1 (DGL behavior).
    # Degrees computed in f32; reciprocal on the EUP (approx, nearly free).
    deg = jnp.sum(a.astype(jnp.float32), axis=-1, keepdims=True)    # (N, 1)
    inv_deg = pl.reciprocal(jnp.maximum(deg, 1.0), approx=True)

    # Accumulate directly into the resident output block (f32).
    o_ref[0] += msg * inv_deg

    # Bias once per destination group, on its last relation.
    @pl.when(last_ref[r] == 1)
    def _():
        o_ref[0] += b_ref[...]


def rgcn_hetero_forward(a_stack, x_types, w_stack, bias,
                        dst_ids, src_ids, first_flags, last_flags):
    """One fused call over all relations of all destination node types.

    a_stack : (R, N, N)              bf16, relations sorted by dst type
    x_types : (T, N, Din_pad)        bf16, one padded feature table per node type
    w_stack : (R, Din_pad, Dout_pad) bf16, per-relation weights (same order as a_stack)
    bias    : (1, Dout_pad)          f32
    returns : (T, N, Dout_pad)       f32
    """
    R, N, _ = a_stack.shape
    T, _, Din = x_types.shape
    Dout = w_stack.shape[-1]

    return pl.pallas_call(
        _rgcn_fused_kernel,
        out_shape=jax.ShapeDtypeStruct((T, N, Dout), jnp.float32),
        grid_spec=pltpu.PrefetchScalarGridSpec(
            num_scalar_prefetch=4,
            grid=(R,),
            in_specs=[
                pl.BlockSpec((1, N, N), lambda r, d, s, f, l: (r, 0, 0)),
                pl.BlockSpec((1, N, Din), lambda r, d, s, f, l: (s[r], 0, 0)),
                pl.BlockSpec((1, Din, Dout), lambda r, d, s, f, l: (r, 0, 0)),
                pl.BlockSpec((1, Dout), lambda r, d, s, f, l: (0, 0)),
            ],
            out_specs=pl.BlockSpec((1, N, Dout),
                                   lambda r, d, s, f, l: (d[r], 0, 0)),
        ),
        compiler_params=pltpu.CompilerParams(
            dimension_semantics=("arbitrary",)),
    )(dst_ids, src_ids, first_flags, last_flags,
      a_stack, x_types, w_stack, bias)


# ------------------------------ glue / setup ---------------------------------
def pad2(x, rows, cols):
    out = jnp.zeros((rows, cols), dtype=jnp.float32)
    return out.at[: x.shape[0], : x.shape[1]].set(x)


def xavier_uniform(key, shape, fan_in, fan_out, gain):
    bound = gain * np.sqrt(6.0 / (fan_in + fan_out))
    return jax.random.uniform(key, shape, jnp.float32, -bound, bound)


if __name__ == "__main__":
    key = jax.random.PRNGKey(0)

    # --- model hyperparameters (small, consistent with the module) ---
    in_dim, out_dim = 16, 8
    # relations: follows(user->user), likes(user->item), rev_likes(item->user)
    rel_names = ["follows", "likes", "rev_likes"]
    num_rels = len(rel_names)          # num_bases == num_rels -> no basis decomposition

    # --- synthetic heterograph: two node types ---
    n_user, n_item = 10, 7

    # TPU-friendly padding: lane-dense 128 on node count and both feature dims.
    N_PAD, DIN_PAD, DOUT_PAD = 128, 128, 128

    k_feat_u, k_feat_i, k_a0, k_a1, k_a2, k_w = jax.random.split(key, 6)

    x_user = jax.random.normal(k_feat_u, (n_user, in_dim), jnp.float32)
    x_item = jax.random.normal(k_feat_i, (n_item, in_dim), jnp.float32)

    # dense 0/1 adjacencies, shape (n_dst, n_src)
    a_follows = (jax.random.uniform(k_a0, (n_user, n_user)) < 0.3).astype(jnp.float32)
    a_likes = (jax.random.uniform(k_a1, (n_item, n_user)) < 0.3).astype(jnp.float32)
    a_rev_likes = (jax.random.uniform(k_a2, (n_user, n_item)) < 0.3).astype(jnp.float32)

    # --- parameters (deterministic init, mirrors nn.Module __init__) ---
    gain = np.sqrt(2.0)  # calculate_gain('relu')
    weight = xavier_uniform(k_w, (num_rels, in_dim, out_dim), in_dim, out_dim, gain)
    h_bias = jnp.zeros((out_dim,), jnp.float32)  # nn.init.zeros_

    # --- node-type feature table: 0 = user, 1 = item (bf16 inputs) ---
    x_types = jnp.stack([pad2(x_user, N_PAD, DIN_PAD),
                         pad2(x_item, N_PAD, DIN_PAD)]).astype(jnp.bfloat16)

    # --- relations sorted by destination type so each dst output block is a
    #     contiguous run of the grid: [follows(u->u), rev_likes(i->u), likes(u->i)]
    a_stack = jnp.stack([pad2(a_follows, N_PAD, N_PAD),
                         pad2(a_rev_likes, N_PAD, N_PAD),
                         pad2(a_likes, N_PAD, N_PAD)]).astype(jnp.bfloat16)
    w_stack = jnp.stack([pad2(weight[0], DIN_PAD, DOUT_PAD),   # follows
                         pad2(weight[2], DIN_PAD, DOUT_PAD),   # rev_likes
                         pad2(weight[1], DIN_PAD, DOUT_PAD)]   # likes
                        ).astype(jnp.bfloat16)
    bias_pad = jnp.zeros((1, DOUT_PAD), jnp.float32).at[0, :out_dim].set(h_bias)

    dst_ids = jnp.array([0, 0, 1], jnp.int32)        # user, user, item
    src_ids = jnp.array([0, 1, 0], jnp.int32)        # user, item, user
    first_flags = jnp.array([1, 0, 1], jnp.int32)    # first relation of each dst group
    last_flags = jnp.array([0, 1, 1], jnp.int32)     # last relation of each dst group

    out = rgcn_hetero_forward(a_stack, x_types, w_stack, bias_pad,
                              dst_ids, src_ids, first_flags, last_flags)
    jax.block_until_ready(out)

    out_user = out[0, :n_user, :out_dim]
    out_item = out[1, :n_item, :out_dim]

    # --- pure-JAX reference (f32 on the bf16-rounded params, exact reciprocal) ---
    def ref_rel(A, X, W):
        m = A @ X
        deg = jnp.maximum(A.sum(-1, keepdims=True), 1.0)
        return (m / deg) @ W

    xu = x_user.astype(jnp.bfloat16).astype(jnp.float32)
    xi = x_item.astype(jnp.bfloat16).astype(jnp.float32)
    w_f = weight.astype(jnp.bfloat16).astype(jnp.float32)

    ref_user = (ref_rel(a_follows, xu, w_f[0])
                + ref_rel(a_rev_likes, xi, w_f[2]) + h_bias)
    ref_item = ref_rel(a_likes, xu, w_f[1]) + h_bias

    assert np.allclose(np.asarray(out_user), np.asarray(ref_user), atol=2e-2, rtol=2e-2)
    assert np.allclose(np.asarray(out_item), np.asarray(ref_item), atol=2e-2, rtol=2e-2)

    print("KERNEL_OK")
</pallas_src>

<mosaic_0001>
module attributes {stable_mosaic.version = 11 : i64} {
  func.func @_rgcn_fused_kernel(%arg0: i32, %arg1: memref<3xi32, #tpu.memory_space<smem>>, %arg2: memref<3xi32, #tpu.memory_space<smem>>, %arg3: memref<3xi32, #tpu.memory_space<smem>>, %arg4: memref<3xi32, #tpu.memory_space<smem>>, %arg5: memref<1x128x128xbf16, #tpu.memory_space<vmem>>, %arg6: memref<1x128x128xbf16, #tpu.memory_space<vmem>>, %arg7: memref<1x128x128xbf16, #tpu.memory_space<vmem>>, %arg8: memref<1x128xf32, #tpu.memory_space<vmem>>, %arg9: memref<1x128x128xf32, #tpu.memory_space<vmem>>) attributes {dimension_semantics = [#tpu.dimension_semantics<arbitrary>], iteration_bounds = array<i64: 3>, scalar_prefetch = 4 : i64, scratch_operands = 0 : i64, tpu.core_type = #tpu.core_type<tc>, window_params = [{transform_indices = @transform_0, window_bounds = array<i64: 1, 128, 128>}, {transform_indices = @transform_1, window_bounds = array<i64: 1, 128, 128>}, {transform_indices = @transform_2, window_bounds = array<i64: 1, 128, 128>}, {pipeline_mode = #tpu.pipeline_mode<synchronous>, transform_indices = @transform_3, window_bounds = array<i64: 1, 128>}, {transform_indices = @transform_4, window_bounds = array<i64: 1, 128, 128>}]} {
    %0 = arith.index_cast %arg0 : i32 to index
    %1 = memref.load %arg3[%0] : memref<3xi32, #tpu.memory_space<smem>>
    %c1_i32 = arith.constant 1 : i32
    %2 = arith.cmpi eq, %1, %c1_i32 : i32
    %3 = arith.extui %2 : i1 to i32
    %c0_i32 = arith.constant 0 : i32
    %4 = arith.cmpi ne, %3, %c0_i32 : i32
    scf.if %4 {
      %cst_19 = arith.constant 0.000000e+00 : f32
      %33 = vector.broadcast %cst_19 : f32 to vector<1x128x128xf32>
      %c0_20 = arith.constant 0 : index
      %c0_21 = arith.constant 0 : index
      %c0_22 = arith.constant 0 : index
      %34 = vector.load %arg9[%c0_20, %c0_21, %c0_22] : memref<1x128x128xf32, #tpu.memory_space<vmem>>, vector<1x128x128xf32>
      tpu.vector_store %arg9[%c0_20, %c0_21, %c0_22], %33 {strides = array<i32>} : memref<1x128x128xf32, #tpu.memory_space<vmem>>, vector<1x128x128xf32>,
    } else {
    }
    %c0 = arith.constant 0 : index
    %c0_0 = arith.constant 0 : index
    %c0_1 = arith.constant 0 : index
    %5 = vector.load %arg5[%c0, %c0_0, %c0_1] : memref<1x128x128xbf16, #tpu.memory_space<vmem>>, vector<1x128x128xbf16>
    %6 = vector.shape_cast %5 : vector<1x128x128xbf16> to vector<128x128xbf16>
    %c0_2 = arith.constant 0 : index
    %c0_3 = arith.constant 0 : index
    %c0_4 = arith.constant 0 : index
    %7 = vector.load %arg6[%c0_2, %c0_3, %c0_4] : memref<1x128x128xbf16, #tpu.memory_space<vmem>>, vector<1x128x128xbf16>
    %8 = vector.shape_cast %7 : vector<1x128x128xbf16> to vector<128x128xbf16>
    %c0_5 = arith.constant 0 : index
    %c0_6 = arith.constant 0 : index
    %c0_7 = arith.constant 0 : index
    %9 = vector.load %arg7[%c0_5, %c0_6, %c0_7] : memref<1x128x128xbf16, #tpu.memory_space<vmem>>, vector<1x128x128xbf16>
    %10 = vector.shape_cast %9 : vector<1x128x128xbf16> to vector<128x128xbf16>
    %cst = arith.constant dense<0.000000e+00> : vector<128x128xf32>
    %11 = tpu.matmul %8, %10, %cst {dimension_numbers = #tpu.dot_dimension_numbers<[1], [0], [0], [1], [0, 0, 1, 1], [], []>} : vector<128x128xbf16>, vector<128x128xbf16>, vector<128x128xf32> -> vector<128x128xf32>
    %12 = arith.truncf %11 : vector<128x128xf32> to vector<128x128xbf16>
    %cst_8 = arith.constant dense<0.000000e+00> : vector<128x128xf32>
    %13 = tpu.matmul %6, %12, %cst_8 {dimension_numbers = #tpu.dot_dimension_numbers<[1], [0], [0], [1], [0, 0, 1, 1], [], []>} : vector<128x128xbf16>, vector<128x128xbf16>, vector<128x128xf32> -> vector<128x128xf32>
    %14 = arith.extf %6 : vector<128x128xbf16> to vector<128x128xf32>
    %cst_9 = arith.constant dense<0.000000e+00> : vector<128xf32>
    %15 = vector.multi_reduction <add>, %14, %cst_9 [1] : vector<128x128xf32> to vector<128xf32>
    %16 = vector.shape_cast %15 : vector<128xf32> to vector<128x1xf32>
    %cst_10 = arith.constant 1.000000e+00 : f32
    %17 = vector.broadcast %cst_10 : f32 to vector<128x1xf32>
    %18 = arith.maximumf %16, %17 : vector<128x1xf32>
    %19 = tpu.reciprocal %18 {approx = true} : vector<128x1xf32> -> vector<128x1xf32>
    %c0_11 = arith.constant 0 : index
    %c0_12 = arith.constant 0 : index
    %c0_13 = arith.constant 0 : index
    %20 = vector.load %arg9[%c0_11, %c0_12, %c0_13] : memref<1x128x128xf32, #tpu.memory_space<vmem>>, vector<1x128x128xf32>
    %21 = vector.shape_cast %20 : vector<1x128x128xf32> to vector<128x128xf32>
    %22 = vector.broadcast %19 : vector<128x1xf32> to vector<128x128xf32>
    %23 = arith.mulf %13, %22 : vector<128x128xf32>
    %24 = arith.addf %21, %23 : vector<128x128xf32>
    %c0_14 = arith.constant 0 : index
    %c0_15 = arith.constant 0 : index
    %c0_16 = arith.constant 0 : index
    %25 = vector.load %arg9[%c0_14, %c0_15, %c0_16] : memref<1x128x128xf32, #tpu.memory_space<vmem>>, vector<1x128x128xf32>
    %26 = vector.shape_cast %25 : vector<1x128x128xf32> to vector<128x128xf32>
    %27 = vector.shape_cast %24 : vector<128x128xf32> to vector<1x128x128xf32>
    tpu.vector_store %arg9[%c0_14, %c0_15, %c0_16], %27 {strides = array<i32>} : memref<1x128x128xf32, #tpu.memory_space<vmem>>, vector<1x128x128xf32>,
    %28 = arith.index_cast %arg0 : i32 to index
    %29 = memref.load %arg4[%28] : memref<3xi32, #tpu.memory_space<smem>>
    %c1_i32_17 = arith.constant 1 : i32
    %30 = arith.cmpi eq, %29, %c1_i32_17 : i32
    %31 = arith.extui %30 : i1 to i32
    %c0_i32_18 = arith.constant 0 : i32
    %32 = arith.cmpi ne, %31, %c0_i32_18 : i32
    scf.if %32 {
      %c0_19 = arith.constant 0 : index
      %c0_20 = arith.constant 0 : index
      %c0_21 = arith.constant 0 : index
      %33 = vector.load %arg9[%c0_19, %c0_20, %c0_21] : memref<1x128x128xf32, #tpu.memory_space<vmem>>, vector<1x128x128xf32>
      %34 = vector.shape_cast %33 : vector<1x128x128xf32> to vector<128x128xf32>
      %c0_22 = arith.constant 0 : index
      %c0_23 = arith.constant 0 : index
      %35 = vector.load %arg8[%c0_22, %c0_23] : memref<1x128xf32, #tpu.memory_space<vmem>>, vector<1x128xf32>
      %36 = vector.broadcast %35 : vector<1x128xf32> to vector<128x128xf32>
      %37 = arith.addf %34, %36 : vector<128x128xf32>
      %c0_24 = arith.constant 0 : index
      %c0_25 = arith.constant 0 : index
      %c0_26 = arith.constant 0 : index
      %38 = vector.load %arg9[%c0_24, %c0_25, %c0_26] : memref<1x128x128xf32, #tpu.memory_space<vmem>>, vector<1x128x128xf32>
      %39 = vector.shape_cast %38 : vector<1x128x128xf32> to vector<128x128xf32>
      %40 = vector.shape_cast %37 : vector<128x128xf32> to vector<1x128x128xf32>
      tpu.vector_store %arg9[%c0_24, %c0_25, %c0_26], %40 {strides = array<i32>} : memref<1x128x128xf32, #tpu.memory_space<vmem>>, vector<1x128x128xf32>,
    } else {
    }
    return
  }
  func.func @transform_0(%arg0: i32, %arg1: memref<3xi32, #tpu.memory_space<smem>>, %arg2: memref<3xi32, #tpu.memory_space<smem>>, %arg3: memref<3xi32, #tpu.memory_space<smem>>, %arg4: memref<3xi32, #tpu.memory_space<smem>>) -> (i32, i32, i32) {
    %c0_i32 = arith.constant 0 : i32
    %c0_i32_0 = arith.constant 0 : i32
    %c0_i32_1 = arith.constant 0 : i32
    return %arg0, %c0_i32, %c0_i32_0 : i32, i32, i32
  }
  func.func @transform_1(%arg0: i32, %arg1: memref<3xi32, #tpu.memory_space<smem>>, %arg2: memref<3xi32, #tpu.memory_space<smem>>, %arg3: memref<3xi32, #tpu.memory_space<smem>>, %arg4: memref<3xi32, #tpu.memory_space<smem>>) -> (i32, i32, i32) {
    %0 = arith.index_cast %arg0 : i32 to index
    %1 = memref.load %arg2[%0] : memref<3xi32, #tpu.memory_space<smem>>
    %c0_i32 = arith.constant 0 : i32
    %c0_i32_0 = arith.constant 0 : i32
    %c0_i32_1 = arith.constant 0 : i32
    return %1, %c0_i32, %c0_i32_0 : i32, i32, i32
  }
  func.func @transform_2(%arg0: i32, %arg1: memref<3xi32, #tpu.memory_space<smem>>, %arg2: memref<3xi32, #tpu.memory_space<smem>>, %arg3: memref<3xi32, #tpu.memory_space<smem>>, %arg4: memref<3xi32, #tpu.memory_space<smem>>) -> (i32, i32, i32) {
    %c0_i32 = arith.constant 0 : i32
    %c0_i32_0 = arith.constant 0 : i32
    %c0_i32_1 = arith.constant 0 : i32
    return %arg0, %c0_i32, %c0_i32_0 : i32, i32, i32
  }
  func.func @transform_3(%arg0: i32, %arg1: memref<3xi32, #tpu.memory_space<smem>>, %arg2: memref<3xi32, #tpu.memory_space<smem>>, %arg3: memref<3xi32, #tpu.memory_space<smem>>, %arg4: memref<3xi32, #tpu.memory_space<smem>>) -> (i32, i32) {
    %c0_i32 = arith.constant 0 : i32
    %c0_i32_0 = arith.constant 0 : i32
    %c0_i32_1 = arith.constant 0 : i32
    return %c0_i32, %c0_i32_0 : i32, i32
  }
  func.func @transform_4(%arg0: i32, %arg1: memref<3xi32, #tpu.memory_space<smem>>, %arg2: memref<3xi32, #tpu.memory_space<smem>>, %arg3: memref<3xi32, #tpu.memory_space<smem>>, %arg4: memref<3xi32, #tpu.memory_space<smem>>) -> (i32, i32, i32) {
    %0 = arith.index_cast %arg0 : i32 to index
    %1 = memref.load %arg1[%0] : memref<3xi32, #tpu.memory_space<smem>>
    %c0_i32 = arith.constant 0 : i32
    %c0_i32_0 = arith.constant 0 : i32
    %c0_i32_1 = arith.constant 0 : i32
    return %1, %c0_i32, %c0_i32_0 : i32, i32, i32
  }
}

</mosaic_0001>

<llo_original>
// kernel: tpu_custom_call.1
$region0: #{tpu_custom_call.1}
  #allocation0 [shape = 'u32[]', space=smem, size = 0x4, offset = 0x4, fixed_abs, tag = 'smem constant byte address 0x4 - core index']
  #allocation1 [shape = 'u32[144,128]{1,0:T(1,128)}', space=vmem, size = 0x12000, scoped, tag = 'internal scratch']
  #allocation2 [shape = 's32[1]{0}', space=sflag, size = 0x4, scoped, tag = 'scoped memory for tpu_custom_call.1']
  #allocation3 [shape = 'u8[512]{0}', space=smem, size = 0x200, scoped, tag = 'prefetched SMEM operand 0']
  #allocation4 [shape = 'u8[512]{0}', space=smem, size = 0x200, scoped, tag = 'prefetched SMEM operand 1']
  #allocation5 [shape = 'u8[512]{0}', space=smem, size = 0x200, scoped, tag = 'prefetched SMEM operand 2']
  #allocation6 [shape = 'u8[512]{0}', space=smem, size = 0x200, scoped, tag = 'prefetched SMEM operand 3']
  %s0 = inlined_call_operand.hbm [shape: s32[3], index: 0, kind: input, shape index: {}]
  %s1 = inlined_call_operand.vmem [shape: s32[3], index: 1, kind: input, shape index: {}]
  %s2 = inlined_call_operand.vmem [shape: s32[3], index: 2, kind: input, shape index: {}]
  %s3 = inlined_call_operand.vmem [shape: s32[3], index: 3, kind: input, shape index: {}]
  %s4 = inlined_call_operand.hbm [shape: bf16[3,128,128], index: 4, kind: input, shape index: {}]
  %s5 = inlined_call_operand.hbm [shape: bf16[2,128,128], index: 5, kind: input, shape index: {}]
  %s6 = inlined_call_operand.hbm [shape: bf16[3,128,128], index: 6, kind: input, shape index: {}]
  %s7 = inlined_call_operand.vmem [shape: f32[1,128], index: 7, kind: input, shape index: {}]
  %s8 = inlined_call_operand.hbm [shape: f32[2,128,128], index: 8, kind: output, shape index: {}]
  %s9 = sld [smem:[#allocation0]]
  $region69: #{tpu_custom_call.1} parent=0
    _
  %s11 = ssub.s32 1, %s9
  %s12 = scalar_select 0, %s11, %s9
  %14 = dma.hbm_to_smem %s0, 16, [#allocation3], [#allocation2]
  %s15 = sshll.u32 %s1, 4
  %s16 = int_to_ptr.vmem [resolvable:$true] %s15
  %18 = dma.vmem_to_smem %s16, 16, [#allocation4], [#allocation2]
  %s19 = sshll.u32 %s2, 4
  %s20 = int_to_ptr.vmem [resolvable:$true] %s19
  %22 = dma.vmem_to_smem %s20, 16, [#allocation5], [#allocation2]
  %s23 = sshll.u32 %s3, 4
  %s24 = int_to_ptr.vmem [resolvable:$true] %s23
  %26 = dma.vmem_to_smem %s24, 16, [#allocation6], [#allocation2]
  %27 = dma.done [#allocation2], 64
  %28 = sfence
  $region1: #{tpu_custom_call.1} parent=0
    #allocation7 [shape = 'u8[65536]{0}', space=vmem, size = 0x10000, scoped, tag = 'input window, operand 4']
    #allocation8 [shape = 's32[2]{0}', space=sflag, size = 0x8, scoped, tag = 'scoped memory for tpu_custom_call.1']
    #allocation9 [shape = 's32[2]{0}', space=sflag, size = 0x8, scoped, tag = 'scoped memory for tpu_custom_call.1']
    #allocation10 [shape = 'u8[65536]{0}', space=vmem, size = 0x10000, scoped, tag = 'input window, operand 5']
    #allocation11 [shape = 's32[2]{0}', space=sflag, size = 0x8, scoped, tag = 'scoped memory for tpu_custom_call.1']
    #allocation12 [shape = 'u8[65536]{0}', space=vmem, size = 0x10000, scoped, tag = 'input window, operand 6']
    #allocation13 [shape = 'u8[131072]{0}', space=vmem, size = 0x20000, scoped, tag = 'output window, operand 0']
    %29 = vsyncpa [#allocation8], 0
    %s30 = scalar_lea.sflag [#allocation8], 1
    %31 = vsyncpa %s30, 0
    %32 = vsyncpa [#allocation11], 0
    %s33 = scalar_lea.sflag [#allocation11], 1
    %34 = vsyncpa %s33, 0
    %35 = vsyncpa [#allocation9], 0
    %s36 = scalar_lea.sflag [#allocation9], 1
    %37 = vsyncpa %s36, 0
    loop: start=0, step=1, limit=5
    $region2: #{tpu_custom_call.1} parent=1 // loop_pre_header
      _
    $region3: #{tpu_custom_call.1} parent=1 // loop_header
      %s39 = sphi 0, %s43
      %p40 = scmp.ge.s32.totalorder %s39, 5
      %s49 = sphi 0, %s51
      %s52 = sphi 0, %s49
      %s53 = sphi 0, %s52
      %s69 = sphi 0, %s53
      %s77 = sphi 0, %s79
      %s80 = sphi 0, %s77
      %s81 = sphi 0, %s80
      %s97 = sphi 0, %s81
      %s103 = sphi 0, %s105
      %s106 = sphi 0, %s103
      %s107 = sphi 0, %s106
      %s123 = sphi 0, %s107
      %s127 = sphi 0, %s127
      %s129 = sphi 0, %s127
      %s130 = sphi 0, %s129
      %s144 = sphi 0, %s130
      %s152 = sphi 0, %s154
      %s155 = sphi 0, %s152
      %s156 = sphi 0, %s155
      %s172 = sphi 0, %s156
    $region4: #{tpu_custom_call.1} parent=1 // loop_header_branch
      %42 = sbr.rel (%p40) target = $region8
    $region5: #{tpu_custom_call.1} parent=1 // loop_body
      %s44 = ssub.s32 %s39, 1
      %s45 = ssub.s32 %s39, 2
      %s46 = sadd.s32 %s39, 1
      %s47 = ssub.s32 %s39, %s46
      %p48 = scmp.eq.s32.totalorder %s47, 0
      %s50 = sadd.s32 %s49, 1
      %s51 = scalar_select %p48, %s49, %s50
      %p54 = pneg %p48
      %p55 = scmp.eq.s32.totalorder %s39, 2
      %p56 = por %p54, %p55
      %p57 = scmp.ne.s32.totalorder %s49, %s52
      %p58 = scmp.eq.s32.totalorder %s39, 0
      %p59 = por %p57, %p58
      %p60 = scmp.ne.s32.totalorder %s49, %s52
      %p61 = scmp.eq.s32.totalorder %s44, 2
      %p62 = por %p60, %p61
      %p63 = scmp.ne.s32.totalorder %s52, %s53
      %p64 = scmp.eq.s32.totalorder %s44, 0
      %p65 = por %p63, %p64
      %p66 = scmp.ne.s32.totalorder %s52, %s53
      %p67 = scmp.eq.s32.totalorder %s45, 2
      %p68 = por %p66, %p67
      %p70 = scmp.ne.s32.totalorder %s53, %s69
      %p71 = scmp.eq.s32.totalorder %s45, 0
      %p72 = por %p70, %p71
      %s73 = sld [smem:[#allocation4 + %s39]]
      %s74 = sld [smem:[#allocation4 + %s46]]
      %s75 = ssub.s32 %s73, %s74
      %p76 = scmp.eq.s32.totalorder %s75, 0
      %s78 = sadd.s32 %s77, 1
      %s79 = scalar_select %p76, %s77, %s78
      %p82 = pneg %p76
      %p83 = scmp.eq.s32.totalorder %s39, 2
      %p84 = por %p82, %p83
      %p85 = scmp.ne.s32.totalorder %s77, %s80
      %p86 = scmp.eq.s32.totalorder %s39, 0
      %p87 = por %p85, %p86
      %p88 = scmp.ne.s32.totalorder %s77, %s80
      %p89 = scmp.eq.s32.totalorder %s44, 2
      %p90 = por %p88, %p89
      %p91 = scmp.ne.s32.totalorder %s80, %s81
      %p92 = scmp.eq.s32.totalorder %s44, 0
      %p93 = por %p91, %p92
      %p94 = scmp.ne.s32.totalorder %s80, %s81
      %p95 = scmp.eq.s32.totalorder %s45, 2
      %p96 = por %p94, %p95
      %p98 = scmp.ne.s32.totalorder %s81, %s97
      %p99 = scmp.eq.s32.totalorder %s45, 0
      %p100 = por %p98, %p99
      %s101 = ssub.s32 %s39, %s46
      %p102 = scmp.eq.s32.totalorder %s101, 0
      %s104 = sadd.s32 %s103, 1
      %s105 = scalar_select %p102, %s103, %s104
      %p108 = pneg %p102
      %p109 = scmp.eq.s32.totalorder %s39, 2
      %p110 = por %p108, %p109
      %p111 = scmp.ne.s32.totalorder %s103, %s106
      %p112 = scmp.eq.s32.totalorder %s39, 0
      %p113 = por %p111, %p112
      %p114 = scmp.ne.s32.totalorder %s103, %s106
      %p115 = scmp.eq.s32.totalorder %s44, 2
      %p116 = por %p114, %p115
      %p117 = scmp.ne.s32.totalorder %s106, %s107
      %p118 = scmp.eq.s32.totalorder %s44, 0
      %p119 = por %p117, %p118
      %p120 = scmp.ne.s32.totalorder %s106, %s107
      %p121 = scmp.eq.s32.totalorder %s45, 2
      %p122 = por %p120, %p121
      %p124 = scmp.ne.s32.totalorder %s107, %s123
      %p125 = scmp.eq.s32.totalorder %s45, 0
      %p126 = por %p124, %p125
      %s128 = sadd.s32 %s127, 1
      %p131 = scmp.eq.s32.totalorder %s39, 2
      %p132 = scmp.ne.s32.totalorder %s127, %s129
      %p133 = scmp.eq.s32.totalorder %s39, 0
      %p134 = por %p132, %p133
      %p135 = scmp.ne.s32.totalorder %s127, %s129
      %p136 = scmp.eq.s32.totalorder %s44, 2
      %p137 = por %p135, %p136
      %p138 = scmp.ne.s32.totalorder %s129, %s130
      %p139 = scmp.eq.s32.totalorder %s44, 0
      %p140 = por %p138, %p139
      %p141 = scmp.ne.s32.totalorder %s129, %s130
      %p142 = scmp.eq.s32.totalorder %s45, 2
      %p143 = por %p141, %p142
      %p145 = scmp.ne.s32.totalorder %s130, %s144
      %p146 = scmp.eq.s32.totalorder %s45, 0
      %p147 = por %p145, %p146
      %s148 = sld [smem:[#allocation3 + %s39]]
      %s149 = sld [smem:[#allocation3 + %s46]]
      %s150 = ssub.s32 %s148, %s149
      %p151 = scmp.eq.s32.totalorder %s150, 0
      %s153 = sadd.s32 %s152, 1
      %s154 = scalar_select %p151, %s152, %s153
      %p157 = pneg %p151
      %p158 = scmp.eq.s32.totalorder %s39, 2
      %p159 = por %p157, %p158
      %p160 = scmp.ne.s32.totalorder %s152, %s155
      %p161 = scmp.eq.s32.totalorder %s39, 0
      %p162 = por %p160, %p161
      %p163 = scmp.ne.s32.totalorder %s152, %s155
      %p164 = scmp.eq.s32.totalorder %s44, 2
      %p165 = por %p163, %p164
      %p166 = scmp.ne.s32.totalorder %s155, %s156
      %p167 = scmp.eq.s32.totalorder %s44, 0
      %p168 = por %p166, %p167
      %p169 = scmp.ne.s32.totalorder %s155, %s156
      %p170 = scmp.eq.s32.totalorder %s45, 2
      %p171 = por %p169, %p170
      %p173 = scmp.ne.s32.totalorder %s156, %s172
      %p174 = scmp.eq.s32.totalorder %s45, 0
      %p175 = por %p173, %p174
      %p176 = scmp.le.s32.totalorder 1, %s39
      %p177 = scmp.lt.s32.totalorder %s39, 4
      %p178 = pnand %p176, %p177
      %p179 = pneg %p178
      // Predicated region
      $region9: #{tpu_custom_call.1} parent=5 // pred_check
        _
      $region10: #{tpu_custom_call.1} parent=5 // pred_check_branch
        %181 = sbr.rel (%p178) target = $region12
      $region11: #{tpu_custom_call.1} parent=5 // pred_region
        %s182 = ssub.s32 %s39, 1
        // Predicated region
        $region13: #{tpu_custom_call.1} parent=11 // pred_check
          %p183 = pneg %p140
        $region14: #{tpu_custom_call.1} parent=11 // pred_check_branch
          %185 = sbr.rel (%p183) target = $region16
        $region15: #{tpu_custom_call.1} parent=11 // pred_region
          _
        $region16: #{tpu_custom_call.1} parent=11 // pred_fallthru
          _
      $region12: #{tpu_custom_call.1} parent=5 // pred_fallthru
        _
      %p186 = scmp.lt.s32.totalorder %s39, 3
      // Predicated region
      $region17: #{tpu_custom_call.1} parent=5 // pred_check
        %p187 = pneg %p186
      $region18: #{tpu_custom_call.1} parent=5 // pred_check_branch
        %189 = sbr.rel (%p187) target = $region20
      $region19: #{tpu_custom_call.1} parent=5 // pred_region
        // Predicated region
        $region21: #{tpu_custom_call.1} parent=19 // pred_check
          %p190 = pneg %p59
        $region22: #{tpu_custom_call.1} parent=19 // pred_check_branch
          %192 = sbr.rel (%p190) target = $region24
        $region23: #{tpu_custom_call.1} parent=19 // pred_region
          %s193 = sand.u32 %s49, 1
          %s194 = scalar_lea.sflag [#allocation8], %s193
          %s195 = sand.u32 %s49, 1
          %s196 = smul.addr %s195, 64
          %s197 = scalar_lea.vmem [#allocation7], %s196
          %s199 = ssub.s32 1024, 1024
          %200 = vsyncadd %s194, %s199
          %s201 = smul.addr %s39, 16
          %s202 = smul.addr %s201, 64
          %s203 = scalar_lea.hbm %s4, %s202
          %s204 = sshll.u32 %s197, 4
          %s205 = int_to_ptr.vmem [resolvable:$true] %s204
          %210 = dma.hbm_to_vmem [thread:$0]  %s203, 1024, %s205, %s194, 64, 64, 4
        $region24: #{tpu_custom_call.1} parent=19 // pred_fallthru
          _
        // Predicated region
        $region25: #{tpu_custom_call.1} parent=19 // pred_check
          %p211 = pneg %p87
        $region26: #{tpu_custom_call.1} parent=19 // pred_check_branch
          %213 = sbr.rel (%p211) target = $region28
        $region27: #{tpu_custom_call.1} parent=19 // pred_region
          %s214 = sand.u32 %s39, 1
          %s215 = scalar_lea.sflag [#allocation11], %s214
          %s216 = sand.u32 %s77, 1
          %s217 = smul.addr %s216, 64
          %s218 = scalar_lea.vmem [#allocation10], %s217
          %s219 = sld [smem:[#allocation4 + %s39]]
          %s221 = ssub.s32 1024, 1024
          %222 = vsyncadd %s215, %s221
          %s223 = smul.addr %s219, 16
          %s224 = smul.addr %s223, 64
          %s225 = scalar_lea.hbm %s5, %s224
          %s226 = sshll.u32 %s218, 4
          %s227 = int_to_ptr.vmem [resolvable:$true] %s226
          %232 = dma.hbm_to_vmem [thread:$0]  %s225, 1024, %s227, %s215, 64, 64, 4
        $region28: #{tpu_custom_call.1} parent=19 // pred_fallthru
          _
        // Predicated region
        $region29: #{tpu_custom_call.1} parent=19 // pred_check
          %p233 = pneg %p113
        $region30: #{tpu_custom_call.1} parent=19 // pred_check_branch
          %235 = sbr.rel (%p233) target = $region32
        $region31: #{tpu_custom_call.1} parent=19 // pred_region
          %s236 = sand.u32 %s39, 1
          %s237 = scalar_lea.sflag [#allocation11], %s236
          %s238 = sand.u32 %s103, 1
          %s239 = smul.addr %s238, 64
          %s240 = scalar_lea.vmem [#allocation12], %s239
          %s242 = ssub.s32 1024, 1024
          %243 = vsyncadd %s237, %s242
          %s244 = smul.addr %s39, 16
          %s245 = smul.addr %s244, 64
          %s246 = scalar_lea.hbm %s6, %s245
          %s247 = sshll.u32 %s240, 4
          %s248 = int_to_ptr.vmem [resolvable:$true] %s247
          %253 = dma.hbm_to_vmem [thread:$0]  %s246, 1024, %s248, %s237, 64, 64, 4
        $region32: #{tpu_custom_call.1} parent=19 // pred_fallthru
          _
      $region20: #{tpu_custom_call.1} parent=5 // pred_fallthru
        _
      %p254 = scmp.le.s32.totalorder 1, %s39
      %p255 = scmp.lt.s32.totalorder %s39, 4
      %p256 = pnand %p254, %p255
      %p257 = pneg %p256
      // Predicated region
      $region33: #{tpu_custom_call.1} parent=5 // pred_check
        _
      $region34: #{tpu_custom_call.1} parent=5 // pred_check_branch
        %259 = sbr.rel (%p256) target = $region36
      $region35: #{tpu_custom_call.1} parent=5 // pred_region
        %s260 = ssub.s32 %s39, 1
        %s261 = sand.u32 %s52, 1
        %s262 = scalar_lea.sflag [#allocation8], %s261
        %s263 = sand.u32 %s52, 1
        %s264 = smul.addr %s263, 64
        %s265 = scalar_lea.vmem [#allocation7], %s264
        // Predicated region
        $region37: #{tpu_custom_call.1} parent=35 // pred_check
          %p266 = pneg %p65
        $region38: #{tpu_custom_call.1} parent=35 // pred_check_branch
          %268 = sbr.rel (%p266) target = $region40
        $region39: #{tpu_custom_call.1} parent=35 // pred_region
          %269 = dma.done %s262, 1024
        $region40: #{tpu_custom_call.1} parent=35 // pred_fallthru
          _
        %s270 = sand.u32 %s44, 1
        %s271 = scalar_lea.sflag [#allocation11], %s270
        %s272 = sand.u32 %s80, 1
        %s273 = smul.addr %s272, 64
        %s274 = scalar_lea.vmem [#allocation10], %s273
        // Predicated region
        $region41: #{tpu_custom_call.1} parent=35 // pred_check
          %p275 = pneg %p93
        $region42: #{tpu_custom_call.1} parent=35 // pred_check_branch
          %277 = sbr.rel (%p275) target = $region44
        $region43: #{tpu_custom_call.1} parent=35 // pred_region
          %278 = dma.done %s271, 1024
        $region44: #{tpu_custom_call.1} parent=35 // pred_fallthru
          _
        %s279 = sand.u32 %s44, 1
        %s280 = scalar_lea.sflag [#allocation11], %s279
        %s281 = sand.u32 %s106, 1
        %s282 = smul.addr %s281, 64
        %s283 = scalar_lea.vmem [#allocation12], %s282
        // Predicated region
        $region45: #{tpu_custom_call.1} parent=35 // pred_check
          %p284 = pneg %p119
        $region46: #{tpu_custom_call.1} parent=35 // pred_check_branch
          %286 = sbr.rel (%p284) target = $region48
        $region47: #{tpu_custom_call.1} parent=35 // pred_region
          %287 = dma.done %s280, 1024
        $region48: #{tpu_custom_call.1} parent=35 // pred_fallthru
          _
        %s288 = sand.u32 %s52, 1
        %s289 = scalar_lea.sflag [#allocation8], %s288
        %s290 = sand.u32 %s52, 1
        %s291 = smul.addr %s290, 64
        %s292 = scalar_lea.vmem [#allocation7], %s291
        %p293 = pneg %p65
        %p294 = pneg %p62
        %s295 = sand.u32 %s44, 1
        %s296 = scalar_lea.sflag [#allocation11], %s295
        %s297 = sand.u32 %s80, 1
        %s298 = smul.addr %s297, 64
        %s299 = scalar_lea.vmem [#allocation10], %s298
        %p300 = pneg %p93
        %p301 = pneg %p90
        %s302 = sand.u32 %s44, 1
        %s303 = scalar_lea.sflag [#allocation11], %s302
        %s304 = sand.u32 %s106, 1
        %s305 = smul.addr %s304, 64
        %s306 = scalar_lea.vmem [#allocation12], %s305
        %p307 = pneg %p119
        %p308 = pneg %p116
        %p309 = pneg %p140
        %p310 = pneg %p137
        %p311 = pneg %p168
        %p312 = pneg %p165
        %s313 = sand.u32 %s155, 1
        %s314 = scalar_lea.sflag [#allocation9], %s313
        %s315 = sand.u32 %s155, 1
        %s316 = smul.addr %s315, 128
        %s317 = scalar_lea.vmem [#allocation13], %s316
        %s318 = sld [smem:[#allocation4 + %s44]]
        %s319 = sld [smem:[#allocation3 + %s44]]
        %s321 = sld [smem:[#allocation5 + %s44]]
        %p322 = scmp.eq.s32.totalorder %s321, 1
        // Predicated region
        $region49: #{tpu_custom_call.1} parent=35 // pred_check
          %p323 = pneg %p322
        $region50: #{tpu_custom_call.1} parent=35 // pred_check_branch
          %325 = sbr.rel (%p323) target = $region52
        $region51: #{tpu_custom_call.1} parent=35 // pred_region
          %326 = vst [vmem:[%s317] sm:$0xff] 0.0
          %327 = vst [vmem:[%s317 + $0x8] sm:$0xff] 0.0
          %328 = vst [vmem:[%s317 + $0x10] sm:$0xff] 0.0
          %329 = vst [vmem:[%s317 + $0x18] sm:$0xff] 0.0
          %330 = vst [vmem:[%s317 + $0x20] sm:$0xff] 0.0
          %331 = vst [vmem:[%s317 + $0x28] sm:$0xff] 0.0
          %332 = vst [vmem:[%s317 + $0x30] sm:$0xff] 0.0
          %333 = vst [vmem:[%s317 + $0x38] sm:$0xff] 0.0
          %334 = vst [vmem:[%s317 + $0x40] sm:$0xff] 0.0
          %335 = vst [vmem:[%s317 + $0x48] sm:$0xff] 0.0
          %336 = vst [vmem:[%s317 + $0x50] sm:$0xff] 0.0
          %337 = vst [vmem:[%s317 + $0x58] sm:$0xff] 0.0
          %338 = vst [vmem:[%s317 + $0x60] sm:$0xff] 0.0
          %339 = vst [vmem:[%s317 + $0x68] sm:$0xff] 0.0
          %340 = vst [vmem:[%s317 + $0x70] sm:$0xff] 0.0
          %341 = vst [vmem:[%s317 + $0x78] sm:$0xff] 0.0
        $region52: #{tpu_custom_call.1} parent=35 // pred_fallthru
          _
        %v342 = vld [vmem:[%s265] sm:$0xf]
        %v343 = vld [vmem:[%s265 + $0x4] sm:$0xf]
        %v344 = vld [vmem:[%s265 + $0x8] sm:$0xf]
        %v345 = vld [vmem:[%s265 + $0xc] sm:$0xf]
        %v346 = vld [vmem:[%s265 + $0x10] sm:$0xf]
        %v347 = vld [vmem:[%s265 + $0x14] sm:$0xf]
        %v348 = vld [vmem:[%s265 + $0x18] sm:$0xf]
        %v349 = vld [vmem:[%s265 + $0x1c] sm:$0xf]
        %v350 = vld [vmem:[%s265 + $0x20] sm:$0xf]
        %v351 = vld [vmem:[%s265 + $0x24] sm:$0xf]
        %v352 = vld [vmem:[%s265 + $0x28] sm:$0xf]
        %v353 = vld [vmem:[%s265 + $0x2c] sm:$0xf]
        %v354 = vld [vmem:[%s265 + $0x30] sm:$0xf]
        %v355 = vld [vmem:[%s265 + $0x34] sm:$0xf]
        %v356 = vld [vmem:[%s265 + $0x38] sm:$0xf]
        %v357 = vld [vmem:[%s265 + $0x3c] sm:$0xf]
        %v358 = vld [vmem:[%s274] sm:$0xf]
        %v359 = vld [vmem:[%s274 + $0x4] sm:$0xf]
        %v360 = vld [vmem:[%s274 + $0x8] sm:$0xf]
        %v361 = vld [vmem:[%s274 + $0xc] sm:$0xf]
        %v362 = vld [vmem:[%s274 + $0x10] sm:$0xf]
        %v363 = vld [vmem:[%s274 + $0x14] sm:$0xf]
        %v364 = vld [vmem:[%s274 + $0x18] sm:$0xf]
        %v365 = vld [vmem:[%s274 + $0x1c] sm:$0xf]
        %v366 = vld [vmem:[%s274 + $0x20] sm:$0xf]
        %v367 = vld [vmem:[%s274 + $0x24] sm:$0xf]
        %v368 = vld [vmem:[%s274 + $0x28] sm:$0xf]
        %v369 = vld [vmem:[%s274 + $0x2c] sm:$0xf]
        %v370 = vld [vmem:[%s274 + $0x30] sm:$0xf]
        %v371 = vld [vmem:[%s274 + $0x34] sm:$0xf]
        %v372 = vld [vmem:[%s274 + $0x38] sm:$0xf]
        %v373 = vld [vmem:[%s274 + $0x3c] sm:$0xf]
        %v374 = vld [vmem:[%s283] sm:$0xf]
        %v375 = vld [vmem:[%s283 + $0x4] sm:$0xf]
        %v376 = vld [vmem:[%s283 + $0x8] sm:$0xf]
        %v377 = vld [vmem:[%s283 + $0xc] sm:$0xf]
        %v378 = vld [vmem:[%s283 + $0x10] sm:$0xf]
        %v379 = vld [vmem:[%s283 + $0x14] sm:$0xf]
        %v380 = vld [vmem:[%s283 + $0x18] sm:$0xf]
        %v381 = vld [vmem:[%s283 + $0x1c] sm:$0xf]
        %v382 = vld [vmem:[%s283 + $0x20] sm:$0xf]
        %v383 = vld [vmem:[%s283 + $0x24] sm:$0xf]
        %v384 = vld [vmem:[%s283 + $0x28] sm:$0xf]
        %v385 = vld [vmem:[%s283 + $0x2c] sm:$0xf]
        %v386 = vld [vmem:[%s283 + $0x30] sm:$0xf]
        %v387 = vld [vmem:[%s283 + $0x34] sm:$0xf]
        %v388 = vld [vmem:[%s283 + $0x38] sm:$0xf]
        %v389 = vld [vmem:[%s283 + $0x3c] sm:$0xf]
        %v406 = vunpack.c.l.b16 %v358
        %v407 = vunpack.c.l.b16 %v359
        %v408 = vunpack.c.l.b16 %v360
        %v409 = vunpack.c.l.b16 %v361
        %v410 = vunpack.c.l.b16 %v362
        %v411 = vunpack.c.l.b16 %v363
        %v412 = vunpack.c.l.b16 %v364
        %v413 = vunpack.c.l.b16 %v365
        %v414 = vunpack.c.l.b16 %v366
        %v415 = vunpack.c.l.b16 %v367
        %v416 = vunpack.c.l.b16 %v368
        %v417 = vunpack.c.l.b16 %v369
        %v418 = vunpack.c.l.b16 %v370
        %v419 = vunpack.c.l.b16 %v371
        %v420 = vunpack.c.l.b16 %v372
        %v421 = vunpack.c.l.b16 %v373
        %v422 = vpack.c.b16 %v407, %v406
        %v423 = vpack.c.b16 %v409, %v408
        %v424 = vpack.c.b16 %v411, %v410
        %v425 = vpack.c.b16 %v413, %v412
        %v426 = vpack.c.b16 %v415, %v414
        %v427 = vpack.c.b16 %v417, %v416
        %v428 = vpack.c.b16 %v419, %v418
        %v429 = vpack.c.b16 %v421, %v420
        %v454 = vunpack.c.l.b16 %v374
        %v455 = vunpack.c.l.b16 %v375
        %v456 = vunpack.c.l.b16 %v376
        %v457 = vunpack.c.l.b16 %v377
        %v458 = vunpack.c.l.b16 %v378
        %v459 = vunpack.c.l.b16 %v379
        %v460 = vunpack.c.l.b16 %v380
        %v461 = vunpack.c.l.b16 %v381
        %v462 = vunpack.c.l.b16 %v382
        %v463 = vunpack.c.l.b16 %v383
        %v464 = vunpack.c.l.b16 %v384
        %v465 = vunpack.c.l.b16 %v385
        %v466 = vunpack.c.l.b16 %v386
        %v467 = vunpack.c.l.b16 %v387
        %v468 = vunpack.c.l.b16 %v388
        %v469 = vunpack.c.l.b16 %v389
        %v470 = vpack.c.b16 %v455, %v454
        %v471 = vpack.c.b16 %v457, %v456
        %v472 = vpack.c.b16 %v459, %v458
        %v473 = vpack.c.b16 %v461, %v460
        %v474 = vpack.c.b16 %v463, %v462
        %v475 = vpack.c.b16 %v465, %v464
        %v476 = vpack.c.b16 %v467, %v466
        %v477 = vpack.c.b16 %v469, %v468
        %486 = vmatprep.subr.bf16.mxu0 0
        %487 = vmatpush1.bf16.msra.mxu0 %v477
        %488 = vmatprep.subr.bf16.mxu0 0
        %489 = vmatpush1.bf16.msra.mxu0 %v476
        %490 = vmatprep.subr.bf16.mxu0 0
        %491 = vmatpush1.bf16.msra.mxu0 %v475
        %492 = vmatprep.subr.bf16.mxu0 0
        %493 = vmatpush1.bf16.msra.mxu0 %v474
        %494 = vmatprep.subr.bf16.mxu0 0
        %495 = vmatpush1.bf16.msra.mxu0 %v473
        %496 = vmatprep.subr.bf16.mxu0 0
        %497 = vmatpush1.bf16.msra.mxu0 %v472
        %498 = vmatprep.subr.bf16.mxu0 0
        %499 = vmatpush1.bf16.msra.mxu0 %v471
        %500 = vmatprep.subr.bf16.mxu0 0
        %501 = vmatpush1.bf16.msra.mxu0 %v470
        %502 = vmatprep.subr.bf16.mxu0 0
        %503 = vmatpush2.bf16.msra.mxu0 0
        %504 = vmatprep.subr.bf16.mxu0 0
        %505 = vmatpush2.bf16.msra.mxu0 0
        %506 = vmatprep.subr.bf16.mxu0 0
        %507 = vmatpush2.bf16.msra.mxu0 0
        %508 = vmatprep.subr.bf16.mxu0 0
        %509 = vmatpush2.bf16.msra.mxu0 0
        %510 = vmatprep.subr.bf16.mxu0 0
        %511 = vmatpush2.bf16.msra.mxu0 0
        %512 = vmatprep.subr.bf16.mxu0 0
        %513 = vmatpush2.bf16.msra.mxu0 0
        %514 = vmatprep.subr.bf16.mxu0 0
        %515 = vmatpush2.bf16.msra.mxu0 0
        %516 = vmatprep.subr.bf16.mxu0 0
        %517 = vmatpush2.bf16.msra.mxu0 0
        %518 = vmatprep.mubr.bf16.mxu0 0
        %519 = vmatmul.mubr.bf16.gmra.mxu0 %v422
        %v520 = vpop.f32.mrf.mxu0
        %v521 = vadd.f32 0.0, %v520
        %v522 = vpop.f32.mrf.mxu0
        %v523 = vpop.f32.mrf.mxu0
        %v524 = vadd.f32 0.0, %v523
        %v525 = vpop.f32.mrf.mxu0
        %526 = vmatprep.mubr.bf16.mxu0 0
        %527 = vmatmul.mubr.bf16.gmra.mxu0 %v423
        %v528 = vpop.f32.mrf.mxu0
        %v529 = vadd.f32 0.0, %v528
        %v530 = vpop.f32.mrf.mxu0
        %v531 = vpop.f32.mrf.mxu0
        %v532 = vadd.f32 0.0, %v531
        %v533 = vpop.f32.mrf.mxu0
        %534 = vmatprep.mubr.bf16.mxu0 0
        %535 = vmatmul.mubr.bf16.gmra.mxu0 %v424
        %v536 = vpop.f32.mrf.mxu0
        %v537 = vadd.f32 0.0, %v536
        %v538 = vpop.f32.mrf.mxu0
        %v539 = vpop.f32.mrf.mxu0
        %v540 = vadd.f32 0.0, %v539
        %v541 = vpop.f32.mrf.mxu0
        %542 = vmatprep.mubr.bf16.mxu0 0
        %543 = vmatmul.mubr.bf16.gmra.mxu0 %v425
        %v544 = vpop.f32.mrf.mxu0
        %v545 = vadd.f32 0.0, %v544
        %v546 = vpop.f32.mrf.mxu0
        %v547 = vpop.f32.mrf.mxu0
        %v548 = vadd.f32 0.0, %v547
        %v549 = vpop.f32.mrf.mxu0
        %550 = vmatprep.mubr.bf16.mxu0 0
        %551 = vmatmul.mubr.bf16.gmra.mxu0 %v426
        %v552 = vpop.f32.mrf.mxu0
        %v553 = vadd.f32 0.0, %v552
        %v554 = vpop.f32.mrf.mxu0
        %v555 = vpop.f32.mrf.mxu0
        %v556 = vadd.f32 0.0, %v555
        %v557 = vpop.f32.mrf.mxu0
        %558 = vmatprep.mubr.bf16.mxu0 0
        %559 = vmatmul.mubr.bf16.gmra.mxu0 %v427
        %v560 = vpop.f32.mrf.mxu0
        %v561 = vadd.f32 0.0, %v560
        %v562 = vpop.f32.mrf.mxu0
        %v563 = vpop.f32.mrf.mxu0
        %v564 = vadd.f32 0.0, %v563
        %v565 = vpop.f32.mrf.mxu0
        %566 = vmatprep.mubr.bf16.mxu0 0
        %567 = vmatmul.mubr.bf16.gmra.mxu0 %v428
        %v568 = vpop.f32.mrf.mxu0
        %v569 = vadd.f32 0.0, %v568
        %v570 = vpop.f32.mrf.mxu0
        %v571 = vpop.f32.mrf.mxu0
        %v572 = vadd.f32 0.0, %v571
        %v573 = vpop.f32.mrf.mxu0
        %574 = vmatprep.mubr.bf16.mxu0 0
        %575 = vmatmul.mubr.bf16.gmra.mxu0 %v429
        %v576 = vpop.f32.mrf.mxu0
        %v577 = vadd.f32 0.0, %v576
        %v578 = vpop.f32.mrf.mxu0
        %v579 = vpop.f32.mrf.mxu0
        %v580 = vadd.f32 0.0, %v579
        %v581 = vpop.f32.mrf.mxu0
        %582 = vdwg.mxu0
        %v583 = vpack.c.bf16 %v524, %v521
        %v584 = vpack.c.bf16 %v532, %v529
        %v585 = vpack.c.bf16 %v540, %v537
        %v586 = vpack.c.bf16 %v548, %v545
        %v587 = vpack.c.bf16 %v556, %v553
        %v588 = vpack.c.bf16 %v564, %v561
        %v589 = vpack.c.bf16 %v572, %v569
        %v590 = vpack.c.bf16 %v580, %v577
        %v607 = vunpack.c.l.b16 %v342
        %v608 = vunpack.c.l.b16 %v343
        %v609 = vunpack.c.l.b16 %v344
        %v610 = vunpack.c.l.b16 %v345
        %v611 = vunpack.c.l.b16 %v346
        %v612 = vunpack.c.l.b16 %v347
        %v613 = vunpack.c.l.b16 %v348
        %v614 = vunpack.c.l.b16 %v349
        %v615 = vunpack.c.l.b16 %v350
        %v616 = vunpack.c.l.b16 %v351
        %v617 = vunpack.c.l.b16 %v352
        %v618 = vunpack.c.l.b16 %v353
        %v619 = vunpack.c.l.b16 %v354
        %v620 = vunpack.c.l.b16 %v355
        %v621 = vunpack.c.l.b16 %v356
        %v622 = vunpack.c.l.b16 %v357
        %v623 = vpack.c.b16 %v608, %v607
        %v624 = vpack.c.b16 %v610, %v609
        %v625 = vpack.c.b16 %v612, %v611
        %v626 = vpack.c.b16 %v614, %v613
        %v627 = vpack.c.b16 %v616, %v615
        %v628 = vpack.c.b16 %v618, %v617
        %v629 = vpack.c.b16 %v620, %v619
        %v630 = vpack.c.b16 %v622, %v621
        %639 = vmatprep.subr.bf16.mxu0 0
        %640 = vmatpush1.bf16.msra.mxu0 %v590
        %641 = vmatprep.subr.bf16.mxu0 0
        %642 = vmatpush1.bf16.msra.mxu0 %v589
        %643 = vmatprep.subr.bf16.mxu0 0
        %644 = vmatpush1.bf16.msra.mxu0 %v588
        %645 = vmatprep.subr.bf16.mxu0 0
        %646 = vmatpush1.bf16.msra.mxu0 %v587
        %647 = vmatprep.subr.bf16.mxu0 0
        %648 = vmatpush1.bf16.msra.mxu0 %v586
        %649 = vmatprep.subr.bf16.mxu0 0
        %650 = vmatpush1.bf16.msra.mxu0 %v585
        %651 = vmatprep.subr.bf16.mxu0 0
        %652 = vmatpush1.bf16.msra.mxu0 %v584
        %653 = vmatprep.subr.bf16.mxu0 0
        %654 = vmatpush1.bf16.msra.mxu0 %v583
        %655 = vmatprep.subr.bf16.mxu0 0
        %656 = vmatpush2.bf16.msra.mxu0 0
        %657 = vmatprep.subr.bf16.mxu0 0
        %658 = vmatpush2.bf16.msra.mxu0 0
        %659 = vmatprep.subr.bf16.mxu0 0
        %660 = vmatpush2.bf16.msra.mxu0 0
        %661 = vmatprep.subr.bf16.mxu0 0
        %662 = vmatpush2.bf16.msra.mxu0 0
        %663 = vmatprep.subr.bf16.mxu0 0
        %664 = vmatpush2.bf16.msra.mxu0 0
        %665 = vmatprep.subr.bf16.mxu0 0
        %666 = vmatpush2.bf16.msra.mxu0 0
        %667 = vmatprep.subr.bf16.mxu0 0
        %668 = vmatpush2.bf16.msra.mxu0 0
        %669 = vmatprep.subr.bf16.mxu0 0
        %670 = vmatpush2.bf16.msra.mxu0 0
        %671 = vmatprep.mubr.bf16.mxu0 0
        %672 = vmatmul.mubr.bf16.gmra.mxu0 %v623
        %v673 = vpop.f32.mrf.mxu0
        %v674 = vadd.f32 0.0, %v673
        %v675 = vpop.f32.mrf.mxu0
        %v676 = vpop.f32.mrf.mxu0
        %v677 = vadd.f32 0.0, %v676
        %v678 = vpop.f32.mrf.mxu0
        %679 = vmatprep.mubr.bf16.mxu0 0
        %680 = vmatmul.mubr.bf16.gmra.mxu0 %v624
        %v681 = vpop.f32.mrf.mxu0
        %v682 = vadd.f32 0.0, %v681
        %v683 = vpop.f32.mrf.mxu0
        %v684 = vpop.f32.mrf.mxu0
        %v685 = vadd.f32 0.0, %v684
        %v686 = vpop.f32.mrf.mxu0
        %687 = vmatprep.mubr.bf16.mxu0 0
        %688 = vmatmul.mubr.bf16.gmra.mxu0 %v625
        %v689 = vpop.f32.mrf.mxu0
        %v690 = vadd.f32 0.0, %v689
        %v691 = vpop.f32.mrf.mxu0
        %v692 = vpop.f32.mrf.mxu0
        %v693 = vadd.f32 0.0, %v692
        %v694 = vpop.f32.mrf.mxu0
        %695 = vmatprep.mubr.bf16.mxu0 0
        %696 = vmatmul.mubr.bf16.gmra.mxu0 %v626
        %v697 = vpop.f32.mrf.mxu0
        %v698 = vadd.f32 0.0, %v697
        %v699 = vpop.f32.mrf.mxu0
        %v700 = vpop.f32.mrf.mxu0
        %v701 = vadd.f32 0.0, %v700
        %v702 = vpop.f32.mrf.mxu0
        %703 = vmatprep.mubr.bf16.mxu0 0
        %704 = vmatmul.mubr.bf16.gmra.mxu0 %v627
        %v705 = vpop.f32.mrf.mxu0
        %v706 = vadd.f32 0.0, %v705
        %v707 = vpop.f32.mrf.mxu0
        %v708 = vpop.f32.mrf.mxu0
        %v709 = vadd.f32 0.0, %v708
        %v710 = vpop.f32.mrf.mxu0
        %711 = vmatprep.mubr.bf16.mxu0 0
        %712 = vmatmul.mubr.bf16.gmra.mxu0 %v628
        %v713 = vpop.f32.mrf.mxu0
        %v714 = vadd.f32 0.0, %v713
        %v715 = vpop.f32.mrf.mxu0
        %v716 = vpop.f32.mrf.mxu0
        %v717 = vadd.f32 0.0, %v716
        %v718 = vpop.f32.mrf.mxu0
        %719 = vmatprep.mubr.bf16.mxu0 0
        %720 = vmatmul.mubr.bf16.gmra.mxu0 %v629
        %v721 = vpop.f32.mrf.mxu0
        %v722 = vadd.f32 0.0, %v721
        %v723 = vpop.f32.mrf.mxu0
        %v724 = vpop.f32.mrf.mxu0
        %v725 = vadd.f32 0.0, %v724
        %v726 = vpop.f32.mrf.mxu0
        %727 = vmatprep.mubr.bf16.mxu0 0
        %728 = vmatmul.mubr.bf16.gmra.mxu0 %v630
        %v729 = vpop.f32.mrf.mxu0
        %v730 = vadd.f32 0.0, %v729
        %v731 = vpop.f32.mrf.mxu0
        %v732 = vpop.f32.mrf.mxu0
        %v733 = vadd.f32 0.0, %v732
        %v734 = vpop.f32.mrf.mxu0
        %735 = vdwg.mxu0
        %v736 = vunpack.c.l.bf16 %v342
        %v737 = vunpack.c.l.bf16 %v343
        %v738 = vunpack.c.l.bf16 %v344
        %v739 = vunpack.c.l.bf16 %v345
        %v740 = vunpack.c.l.bf16 %v346
        %v741 = vunpack.c.l.bf16 %v347
        %v742 = vunpack.c.l.bf16 %v348
        %v743 = vunpack.c.l.bf16 %v349
        %v744 = vunpack.c.l.bf16 %v350
        %v745 = vunpack.c.l.bf16 %v351
        %v746 = vunpack.c.l.bf16 %v352
        %v747 = vunpack.c.l.bf16 %v353
        %v748 = vunpack.c.l.bf16 %v354
        %v749 = vunpack.c.l.bf16 %v355
        %v750 = vunpack.c.l.bf16 %v356
        %v751 = vunpack.c.l.bf16 %v357
        %752 = vadd.xlane.f32.xlu0 %v736
        %v753 = vpop.xlane.xlu0 %752
        %754 = vadd.xlane.f32.xlu0 %v737
        %v755 = vpop.xlane.xlu0 %754
        %756 = vadd.xlane.f32.xlu0 %v738
        %v757 = vpop.xlane.xlu0 %756
        %758 = vadd.xlane.f32.xlu0 %v739
        %v759 = vpop.xlane.xlu0 %758
        %760 = vadd.xlane.f32.xlu0 %v740
        %v761 = vpop.xlane.xlu0 %760
        %762 = vadd.xlane.f32.xlu0 %v741
        %v763 = vpop.xlane.xlu0 %762
        %764 = vadd.xlane.f32.xlu0 %v742
        %v765 = vpop.xlane.xlu0 %764
        %766 = vadd.xlane.f32.xlu0 %v743
        %v767 = vpop.xlane.xlu0 %766
        %768 = vadd.xlane.f32.xlu0 %v744
        %v769 = vpop.xlane.xlu0 %768
        %770 = vadd.xlane.f32.xlu0 %v745
        %v771 = vpop.xlane.xlu0 %770
        %772 = vadd.xlane.f32.xlu0 %v746
        %v773 = vpop.xlane.xlu0 %772
        %774 = vadd.xlane.f32.xlu0 %v747
        %v775 = vpop.xlane.xlu0 %774
        %776 = vadd.xlane.f32.xlu0 %v748
        %v777 = vpop.xlane.xlu0 %776
        %778 = vadd.xlane.f32.xlu0 %v749
        %v779 = vpop.xlane.xlu0 %778
        %780 = vadd.xlane.f32.xlu0 %v750
        %v781 = vpop.xlane.xlu0 %780
        %782 = vadd.xlane.f32.xlu0 %v751
        %v783 = vpop.xlane.xlu0 %782
        %v784 = vmax.f32 %v753, 1.0
        %v785 = vmax.f32 %v755, 1.0
        %v786 = vmax.f32 %v757, 1.0
        %v787 = vmax.f32 %v759, 1.0
        %v788 = vmax.f32 %v761, 1.0
        %v789 = vmax.f32 %v763, 1.0
        %v790 = vmax.f32 %v765, 1.0
        %v791 = vmax.f32 %v767, 1.0
        %v792 = vmax.f32 %v769, 1.0
        %v793 = vmax.f32 %v771, 1.0
        %v794 = vmax.f32 %v773, 1.0
        %v795 = vmax.f32 %v775, 1.0
        %v796 = vmax.f32 %v777, 1.0
        %v797 = vmax.f32 %v779, 1.0
        %v798 = vmax.f32 %v781, 1.0
        %v799 = vmax.f32 %v783, 1.0
        %v800 = vrcp.pop %v784
        %v801 = vrcp.pop %v785
        %v802 = vrcp.pop %v786
        %v803 = vrcp.pop %v787
        %v804 = vrcp.pop %v788
        %v805 = vrcp.pop %v789
        %v806 = vrcp.pop %v790
        %v807 = vrcp.pop %v791
        %v808 = vrcp.pop %v792
        %v809 = vrcp.pop %v793
        %v810 = vrcp.pop %v794
        %v811 = vrcp.pop %v795
        %v812 = vrcp.pop %v796
        %v813 = vrcp.pop %v797
        %v814 = vrcp.pop %v798
        %v815 = vrcp.pop %v799
        %v816 = vld [vmem:[%s317] sm:$0xff]
        %v817 = vld [vmem:[%s317 + $0x8] sm:$0xff]
        %v818 = vld [vmem:[%s317 + $0x10] sm:$0xff]
        %v819 = vld [vmem:[%s317 + $0x18] sm:$0xff]
        %v820 = vld [vmem:[%s317 + $0x20] sm:$0xff]
        %v821 = vld [vmem:[%s317 + $0x28] sm:$0xff]
        %v822 = vld [vmem:[%s317 + $0x30] sm:$0xff]
        %v823 = vld [vmem:[%s317 + $0x38] sm:$0xff]
        %v824 = vld [vmem:[%s317 + $0x40] sm:$0xff]
        %v825 = vld [vmem:[%s317 + $0x48] sm:$0xff]
        %v826 = vld [vmem:[%s317 + $0x50] sm:$0xff]
        %v827 = vld [vmem:[%s317 + $0x58] sm:$0xff]
        %v828 = vld [vmem:[%s317 + $0x60] sm:$0xff]
        %v829 = vld [vmem:[%s317 + $0x68] sm:$0xff]
        %v830 = vld [vmem:[%s317 + $0x70] sm:$0xff]
        %v831 = vld [vmem:[%s317 + $0x78] sm:$0xff]
        %v832 = vmul.f32 %v674, %v800
        %v833 = vmul.f32 %v677, %v801
        %v834 = vmul.f32 %v682, %v802
        %v835 = vmul.f32 %v685, %v803
        %v836 = vmul.f32 %v690, %v804
        %v837 = vmul.f32 %v693, %v805
        %v838 = vmul.f32 %v698, %v806
        %v839 = vmul.f32 %v701, %v807
        %v840 = vmul.f32 %v706, %v808
        %v841 = vmul.f32 %v709, %v809
        %v842 = vmul.f32 %v714, %v810
        %v843 = vmul.f32 %v717, %v811
        %v844 = vmul.f32 %v722, %v812
        %v845 = vmul.f32 %v725, %v813
        %v846 = vmul.f32 %v730, %v814
        %v847 = vmul.f32 %v733, %v815
        %v848 = vadd.f32 %v816, %v832
        %v849 = vadd.f32 %v817, %v833
        %v850 = vadd.f32 %v818, %v834
        %v851 = vadd.f32 %v819, %v835
        %v852 = vadd.f32 %v820, %v836
        %v853 = vadd.f32 %v821, %v837
        %v854 = vadd.f32 %v822, %v838
        %v855 = vadd.f32 %v823, %v839
        %v856 = vadd.f32 %v824, %v840
        %v857 = vadd.f32 %v825, %v841
        %v858 = vadd.f32 %v826, %v842
        %v859 = vadd.f32 %v827, %v843
        %v860 = vadd.f32 %v828, %v844
        %v861 = vadd.f32 %v829, %v845
        %v862 = vadd.f32 %v830, %v846
        %v863 = vadd.f32 %v831, %v847
        %864 = vst [vmem:[%s317] sm:$0xff] %v848
        %865 = vst [vmem:[%s317 + $0x8] sm:$0xff] %v849
        %866 = vst [vmem:[%s317 + $0x10] sm:$0xff] %v850
        %867 = vst [vmem:[%s317 + $0x18] sm:$0xff] %v851
        %868 = vst [vmem:[%s317 + $0x20] sm:$0xff] %v852
        %869 = vst [vmem:[%s317 + $0x28] sm:$0xff] %v853
        %870 = vst [vmem:[%s317 + $0x30] sm:$0xff] %v854
        %871 = vst [vmem:[%s317 + $0x38] sm:$0xff] %v855
        %872 = vst [vmem:[%s317 + $0x40] sm:$0xff] %v856
        %873 = vst [vmem:[%s317 + $0x48] sm:$0xff] %v857
        %874 = vst [vmem:[%s317 + $0x50] sm:$0xff] %v858
        %875 = vst [vmem:[%s317 + $0x58] sm:$0xff] %v859
        %876 = vst [vmem:[%s317 + $0x60] sm:$0xff] %v860
        %877 = vst [vmem:[%s317 + $0x68] sm:$0xff] %v861
        %878 = vst [vmem:[%s317 + $0x70] sm:$0xff] %v862
        %879 = vst [vmem:[%s317 + $0x78] sm:$0xff] %v863
        %s880 = sld [smem:[#allocation6 + %s44]]
        %p881 = scmp.eq.s32.totalorder %s880, 1
        // Predicated region
        $region53: #{tpu_custom_call.1} parent=35 // pred_check
          %p882 = pneg %p881
        $region54: #{tpu_custom_call.1} parent=35 // pred_check_branch
          %884 = sbr.rel (%p882) target = $region56
        $region55: #{tpu_custom_call.1} parent=35 // pred_region
          %v885 = vld [vmem:[%s317] sm:$0xff]
          %v886 = vld [vmem:[%s317 + $0x8] sm:$0xff]
          %v887 = vld [vmem:[%s317 + $0x10] sm:$0xff]
          %v888 = vld [vmem:[%s317 + $0x18] sm:$0xff]
          %v889 = vld [vmem:[%s317 + $0x20] sm:$0xff]
          %v890 = vld [vmem:[%s317 + $0x28] sm:$0xff]
          %v891 = vld [vmem:[%s317 + $0x30] sm:$0xff]
          %v892 = vld [vmem:[%s317 + $0x38] sm:$0xff]
          %v893 = vld [vmem:[%s317 + $0x40] sm:$0xff]
          %v894 = vld [vmem:[%s317 + $0x48] sm:$0xff]
          %v895 = vld [vmem:[%s317 + $0x50] sm:$0xff]
          %v896 = vld [vmem:[%s317 + $0x58] sm:$0xff]
          %v897 = vld [vmem:[%s317 + $0x60] sm:$0xff]
          %v898 = vld [vmem:[%s317 + $0x68] sm:$0xff]
          %v899 = vld [vmem:[%s317 + $0x70] sm:$0xff]
          %v900 = vld [vmem:[%s317 + $0x78] sm:$0xff]
          %v901 = vld [vmem:[%s7] sm:$0x1]
          %v903 = vlaneseq
          %v904 = vshrl.u32 %v903, 7
          %v905 = vsub.s32 0, %v904
          %v906 = vrot.slane %v901, %v905
          %v908 = vadd.f32 %v885, %v906
          %v909 = vadd.f32 %v886, %v906
          %v910 = vadd.f32 %v887, %v906
          %v911 = vadd.f32 %v888, %v906
          %v912 = vadd.f32 %v889, %v906
          %v913 = vadd.f32 %v890, %v906
          %v914 = vadd.f32 %v891, %v906
          %v915 = vadd.f32 %v892, %v906
          %v916 = vadd.f32 %v893, %v906
          %v917 = vadd.f32 %v894, %v906
          %v918 = vadd.f32 %v895, %v906
          %v919 = vadd.f32 %v896, %v906
          %v920 = vadd.f32 %v897, %v906
          %v921 = vadd.f32 %v898, %v906
          %v922 = vadd.f32 %v899, %v906
          %v923 = vadd.f32 %v900, %v906
          %924 = vst [vmem:[%s317] sm:$0xff] %v908
          %925 = vst [vmem:[%s317 + $0x8] sm:$0xff] %v909
          %926 = vst [vmem:[%s317 + $0x10] sm:$0xff] %v910
          %927 = vst [vmem:[%s317 + $0x18] sm:$0xff] %v911
          %928 = vst [vmem:[%s317 + $0x20] sm:$0xff] %v912
          %929 = vst [vmem:[%s317 + $0x28] sm:$0xff] %v913
          %930 = vst [vmem:[%s317 + $0x30] sm:$0xff] %v914
          %931 = vst [vmem:[%s317 + $0x38] sm:$0xff] %v915
          %932 = vst [vmem:[%s317 + $0x40] sm:$0xff] %v916
          %933 = vst [vmem:[%s317 + $0x48] sm:$0xff] %v917
          %934 = vst [vmem:[%s317 + $0x50] sm:$0xff] %v918
          %935 = vst [vmem:[%s317 + $0x58] sm:$0xff] %v919
          %936 = vst [vmem:[%s317 + $0x60] sm:$0xff] %v920
          %937 = vst [vmem:[%s317 + $0x68] sm:$0xff] %v921
          %938 = vst [vmem:[%s317 + $0x70] sm:$0xff] %v922
          %939 = vst [vmem:[%s317 + $0x78] sm:$0xff] %v923
        $region56: #{tpu_custom_call.1} parent=35 // pred_fallthru
          _
        %s940 = sand.u32 %s155, 1
        %s941 = scalar_lea.sflag [#allocation9], %s940
        %s942 = sand.u32 %s155, 1
        %s943 = smul.addr %s942, 128
        %s944 = scalar_lea.vmem [#allocation13], %s943
        // Predicated region
        $region57: #{tpu_custom_call.1} parent=35 // pred_check
          %p945 = pneg %p165
        $region58: #{tpu_custom_call.1} parent=35 // pred_check_branch
          %947 = sbr.rel (%p945) target = $region60
        $region59: #{tpu_custom_call.1} parent=35 // pred_region
          %s948 = sld [smem:[#allocation3 + %s44]]
          %s950 = ssub.s32 2048, 2048
          %951 = vsyncadd %s941, %s950
          %s952 = smul.addr %s948, 16
          %s953 = smul.addr %s952, 128
          %s954 = scalar_lea.hbm %s8, %s953
          %s955 = sshll.u32 %s944, 4
          %s956 = int_to_ptr.vmem [resolvable:$true] %s955
          %961 = dma.vmem_to_hbm [thread:$0]  %s956, 2048, %s954, %s941, 128, 128, 8
        $region60: #{tpu_custom_call.1} parent=35 // pred_fallthru
          _
      $region36: #{tpu_custom_call.1} parent=5 // pred_fallthru
        _
      %p962 = scmp.le.s32.totalorder 2, %s39
      // Predicated region
      $region61: #{tpu_custom_call.1} parent=5 // pred_check
        %p963 = pneg %p962
      $region62: #{tpu_custom_call.1} parent=5 // pred_check_branch
        %965 = sbr.rel (%p963) target = $region64
      $region63: #{tpu_custom_call.1} parent=5 // pred_region
        %s966 = ssub.s32 %s39, 2
        // Predicated region
        $region65: #{tpu_custom_call.1} parent=63 // pred_check
          %p967 = pneg %p171
        $region66: #{tpu_custom_call.1} parent=63 // pred_check_branch
          %969 = sbr.rel (%p967) target = $region68
        $region67: #{tpu_custom_call.1} parent=63 // pred_region
          %s970 = sand.u32 %s156, 1
          %s971 = scalar_lea.sflag [#allocation9], %s970
          %s972 = sand.u32 %s156, 1
          %s973 = smul.addr %s972, 128
          %s974 = scalar_lea.vmem [#allocation13], %s973
          %975 = dma.done %s971, 2048
        $region68: #{tpu_custom_call.1} parent=63 // pred_fallthru
          _
      $region64: #{tpu_custom_call.1} parent=5 // pred_fallthru
        _
    $region6: #{tpu_custom_call.1} parent=1 // loop_footer
      %s43 = sadd.s32 1, %s39
    $region7: #{tpu_custom_call.1} parent=1 // loop_footer_branch
      %38 = sbr.rel target = $region3
    $region8: #{tpu_custom_call.1} parent=1 // loop_exit
      _
    %976 = vsyncpa [#allocation8], 1
    %s977 = scalar_lea.sflag [#allocation8], 1
    %978 = vsyncpa %s977, 1
    %979 = vsyncpa [#allocation11], 1
    %s980 = scalar_lea.sflag [#allocation11], 1
    %981 = vsyncpa %s980, 1
    %982 = vsyncpa [#allocation9], 1
    %s983 = scalar_lea.sflag [#allocation9], 1
    %984 = vsyncpa %s983, 1

</llo_original>
